<compile_context>
chip_gen: v5e
topology: v5e:2x2
jax: 0.10.0
libtpu: 0.0.40
codegen_flags: <defaults>
</compile_context>

<pallas_src>
import jax
import jax.numpy as jnp
from jax.experimental import pallas as pl
from jax.experimental.pallas import tpu as pltpu


def _rec_head_kernel(f_ref, w1a_ref, w1b_ref, b1_ref, w2_ref, b2_ref,
                     w3_ref, b3_ref, o_ref):
    # f_ref: (TB, T, D) bf16 feature tile.
    t = f_ref.shape[1]
    f = f_ref[...].astype(jnp.float32)

    # Sequence reductions in f32; mean as sum * (1/T) with a Python constant.
    f_mean = (jnp.sum(f, axis=1) * (1.0 / t)).astype(jnp.bfloat16)   # (TB, D)
    f_max = jnp.max(f, axis=1).astype(jnp.bfloat16)                  # (TB, D)

    # Layer 1 without concat: two dots accumulate into one f32 result.
    h1 = jnp.dot(f_mean, w1a_ref[...], preferred_element_type=jnp.float32)
    h1 = h1 + jnp.dot(f_max, w1b_ref[...], preferred_element_type=jnp.float32)
    h1 = jnp.maximum(h1 + b1_ref[...], 0.0)

    h2 = jnp.dot(h1.astype(jnp.bfloat16), w2_ref[...],
                 preferred_element_type=jnp.float32)
    h2 = jnp.maximum(h2 + b2_ref[...], 0.0)

    out = jnp.dot(h2.astype(jnp.bfloat16), w3_ref[...],
                  preferred_element_type=jnp.float32) + b3_ref[...]

    o_ref[...] = out.astype(o_ref.dtype)


def rec_head_forward(features, params, *, batch_tile=256):
    """features: (B, T, D). params: dict with w1,b1,w2,b2,w3,b3 (f32)."""
    B, T, D = features.shape
    w1, b1 = params["w1"], params["b1"]
    w2, b2 = params["w2"], params["b2"]
    w3, b3 = params["w3"], params["b3"]
    C = w3.shape[1]
    assert w1.shape[0] == 2 * D, "rec_head_dim must equal 2*D"

    # Lane-dense output: pad the category axis up to a multiple of 128.
    c_pad = max(128, pl.cdiv(C, 128) * 128)
    w3p = jnp.zeros((w3.shape[0], c_pad), w3.dtype).at[:, :C].set(w3)
    b3p = jnp.zeros((1, c_pad), b3.dtype).at[:, :C].set(b3)

    # Remove the lane-axis concat: split the first weight matrix in halves.
    w1a, w1b = w1[:D, :], w1[D:, :]

    # bf16 matmul inputs (accumulation stays f32 inside the kernel).
    f_bf = features.astype(jnp.bfloat16)
    w1a_bf = w1a.astype(jnp.bfloat16)
    w1b_bf = w1b.astype(jnp.bfloat16)
    w2_bf = w2.astype(jnp.bfloat16)
    w3_bf = w3p.astype(jnp.bfloat16)
    b1_f = b1.astype(jnp.float32)
    b2_f = b2.astype(jnp.float32)
    b3_f = b3p.astype(jnp.float32)

    tb = min(batch_tile, B)
    grid = (pl.cdiv(B, tb),)

    def resident(a):
        # Same block index every step -> stays VMEM-resident (no re-DMA).
        return pl.BlockSpec(a.shape, lambda i: (0,) * a.ndim)

    flops = 2 * B * (2 * D * 512 + 512 * 128 + 128 * c_pad)
    bytes_accessed = (
        f_bf.size * 2
        + (w1a_bf.size + w1b_bf.size + w2_bf.size + w3_bf.size) * 2
        + (b1_f.size + b2_f.size + b3_f.size) * 4
        + B * c_pad * 4)

    out = pl.pallas_call(
        _rec_head_kernel,
        out_shape=jax.ShapeDtypeStruct((B, c_pad), jnp.float32),
        grid=grid,
        in_specs=[
            pl.BlockSpec((tb, T, D), lambda i: (i, 0, 0)),
            resident(w1a_bf), resident(w1b_bf), resident(b1_f),
            resident(w2_bf), resident(b2_f),
            resident(w3_bf), resident(b3_f),
        ],
        out_specs=pl.BlockSpec((tb, c_pad), lambda i: (i, 0)),
        compiler_params=pltpu.CompilerParams(
            dimension_semantics=("parallel",),
            vmem_limit_bytes=32 << 20),
        cost_estimate=pl.CostEstimate(
            flops=flops, transcendentals=0, bytes_accessed=bytes_accessed),
    )(f_bf, w1a_bf, w1b_bf, b1_f, w2_bf, b2_f, w3_bf, b3_f)

    return out[:, :C]


def init_params(key, rec_head_dim, num_category):
    """Deterministic init matching PyTorch Linear default U(-1/sqrt(fan_in), ...)."""
    dims = [(rec_head_dim, 512), (512, 128), (128, num_category)]
    params = {}
    for i, (fan_in, fan_out) in enumerate(dims, start=1):
        key, kw, kb = jax.random.split(key, 3)
        bound = 1.0 / jnp.sqrt(float(fan_in))
        params[f"w{i}"] = jax.random.uniform(
            kw, (fan_in, fan_out), jnp.float32, minval=-bound, maxval=bound)
        # biases kept 2-D (1, fan_out) for TPU-friendly broadcasting.
        params[f"b{i}"] = jax.random.uniform(
            kb, (1, fan_out), jnp.float32, minval=-bound, maxval=bound)
    return params


def rec_head_reference(features, params):
    """Pure-JAX f32 reference for correctness check."""
    x = jnp.concatenate(
        [jnp.mean(features, axis=1), jnp.max(features, axis=1)], axis=-1)
    h1 = jnp.maximum(x @ params["w1"] + params["b1"], 0.0)
    h2 = jnp.maximum(h1 @ params["w2"] + params["b2"], 0.0)
    return h2 @ params["w3"] + params["b3"]


if __name__ == "__main__":
    # Small shapes: batch=2, seq=8, feature=32 -> rec_head_dim = 2*32 = 64.
    B, T, D = 2, 8, 32
    rec_head_dim = 2 * D
    num_category = 10

    key = jax.random.PRNGKey(0)
    key, kf = jax.random.split(key)
    features = jax.random.normal(kf, (B, T, D), dtype=jnp.float32)
    params = init_params(key, rec_head_dim, num_category)

    out = rec_head_forward(features, params)
    out = jax.block_until_ready(out)

    ref = rec_head_reference(features, params)
    assert out.shape == (B, num_category)
    # bf16 matmul inputs inside the kernel -> relaxed tolerance vs f32 reference.
    assert jnp.allclose(out, ref, atol=2e-2, rtol=2e-2), "mismatch vs reference"

    print("KERNEL_OK")
</pallas_src>

<mosaic_0001>
module attributes {stable_mosaic.version = 11 : i64} {
  func.func @_rec_head_kernel(%arg0: i32, %arg1: memref<2x8x32xbf16, #tpu.memory_space<vmem>>, %arg2: memref<32x512xbf16, #tpu.memory_space<vmem>>, %arg3: memref<32x512xbf16, #tpu.memory_space<vmem>>, %arg4: memref<1x512xf32, #tpu.memory_space<vmem>>, %arg5: memref<512x128xbf16, #tpu.memory_space<vmem>>, %arg6: memref<1x128xf32, #tpu.memory_space<vmem>>, %arg7: memref<128x128xbf16, #tpu.memory_space<vmem>>, %arg8: memref<1x128xf32, #tpu.memory_space<vmem>>, %arg9: memref<2x128xf32, #tpu.memory_space<vmem>>) attributes {dimension_semantics = [#tpu.dimension_semantics<parallel>], iteration_bounds = array<i64: 1>, scalar_prefetch = 0 : i64, scratch_operands = 0 : i64, tpu.core_type = #tpu.core_type<tc>, window_params = [{transform_indices = @transform_0, window_bounds = array<i64: 2, 8, 32>}, {pipeline_mode = #tpu.pipeline_mode<synchronous>, transform_indices = @transform_1, window_bounds = array<i64: 32, 512>}, {pipeline_mode = #tpu.pipeline_mode<synchronous>, transform_indices = @transform_2, window_bounds = array<i64: 32, 512>}, {pipeline_mode = #tpu.pipeline_mode<synchronous>, transform_indices = @transform_3, window_bounds = array<i64: 1, 512>}, {pipeline_mode = #tpu.pipeline_mode<synchronous>, transform_indices = @transform_4, window_bounds = array<i64: 512, 128>}, {pipeline_mode = #tpu.pipeline_mode<synchronous>, transform_indices = @transform_5, window_bounds = array<i64: 1, 128>}, {pipeline_mode = #tpu.pipeline_mode<synchronous>, transform_indices = @transform_6, window_bounds = array<i64: 128, 128>}, {pipeline_mode = #tpu.pipeline_mode<synchronous>, transform_indices = @transform_7, window_bounds = array<i64: 1, 128>}, {transform_indices = @transform_8, window_bounds = array<i64: 2, 128>}]} {
    %c0 = arith.constant 0 : index
    %c0_0 = arith.constant 0 : index
    %c0_1 = arith.constant 0 : index
    %0 = vector.load %arg1[%c0, %c0_0, %c0_1] : memref<2x8x32xbf16, #tpu.memory_space<vmem>>, vector<2x8x32xbf16>
    %1 = arith.extf %0 : vector<2x8x32xbf16> to vector<2x8x32xf32>
    %cst = arith.constant dense<0.000000e+00> : vector<2x32xf32>
    %2 = vector.multi_reduction <add>, %1, %cst [1] : vector<2x8x32xf32> to vector<2x32xf32>
    %cst_2 = arith.constant 1.250000e-01 : f32
    %3 = vector.broadcast %cst_2 : f32 to vector<2x32xf32>
    %4 = arith.mulf %2, %3 : vector<2x32xf32>
    %5 = arith.truncf %4 : vector<2x32xf32> to vector<2x32xbf16>
    %cst_3 = arith.constant dense<0xFF800000> : vector<2x32xf32>
    %6 = vector.multi_reduction <maximumf>, %1, %cst_3 [1] : vector<2x8x32xf32> to vector<2x32xf32>
    %7 = arith.truncf %6 : vector<2x32xf32> to vector<2x32xbf16>
    %c0_4 = arith.constant 0 : index
    %c0_5 = arith.constant 0 : index
    %8 = vector.load %arg2[%c0_4, %c0_5] : memref<32x512xbf16, #tpu.memory_space<vmem>>, vector<32x512xbf16>
    %cst_6 = arith.constant dense<0.000000e+00> : vector<2x512xf32>
    %9 = tpu.matmul %5, %8, %cst_6 {dimension_numbers = #tpu.dot_dimension_numbers<[1], [0], [0], [1], [0, 0, 1, 1], [], []>} : vector<2x32xbf16>, vector<32x512xbf16>, vector<2x512xf32> -> vector<2x512xf32>
    %c0_7 = arith.constant 0 : index
    %c0_8 = arith.constant 0 : index
    %10 = vector.load %arg3[%c0_7, %c0_8] : memref<32x512xbf16, #tpu.memory_space<vmem>>, vector<32x512xbf16>
    %cst_9 = arith.constant dense<0.000000e+00> : vector<2x512xf32>
    %11 = tpu.matmul %7, %10, %cst_9 {dimension_numbers = #tpu.dot_dimension_numbers<[1], [0], [0], [1], [0, 0, 1, 1], [], []>} : vector<2x32xbf16>, vector<32x512xbf16>, vector<2x512xf32> -> vector<2x512xf32>
    %12 = arith.addf %9, %11 : vector<2x512xf32>
    %c0_10 = arith.constant 0 : index
    %c0_11 = arith.constant 0 : index
    %13 = vector.load %arg4[%c0_10, %c0_11] : memref<1x512xf32, #tpu.memory_space<vmem>>, vector<1x512xf32>
    %14 = vector.broadcast %13 : vector<1x512xf32> to vector<2x512xf32>
    %15 = arith.addf %12, %14 : vector<2x512xf32>
    %cst_12 = arith.constant 0.000000e+00 : f32
    %16 = vector.broadcast %cst_12 : f32 to vector<2x512xf32>
    %17 = arith.maximumf %15, %16 : vector<2x512xf32>
    %18 = arith.truncf %17 : vector<2x512xf32> to vector<2x512xbf16>
    %c0_13 = arith.constant 0 : index
    %c0_14 = arith.constant 0 : index
    %19 = vector.load %arg5[%c0_13, %c0_14] : memref<512x128xbf16, #tpu.memory_space<vmem>>, vector<512x128xbf16>
    %cst_15 = arith.constant dense<0.000000e+00> : vector<2x128xf32>
    %20 = tpu.matmul %18, %19, %cst_15 {dimension_numbers = #tpu.dot_dimension_numbers<[1], [0], [0], [1], [0, 0, 1, 1], [], []>} : vector<2x512xbf16>, vector<512x128xbf16>, vector<2x128xf32> -> vector<2x128xf32>
    %c0_16 = arith.constant 0 : index
    %c0_17 = arith.constant 0 : index
    %21 = vector.load %arg6[%c0_16, %c0_17] : memref<1x128xf32, #tpu.memory_space<vmem>>, vector<1x128xf32>
    %22 = vector.broadcast %21 : vector<1x128xf32> to vector<2x128xf32>
    %23 = arith.addf %20, %22 : vector<2x128xf32>
    %cst_18 = arith.constant 0.000000e+00 : f32
    %24 = vector.broadcast %cst_18 : f32 to vector<2x128xf32>
    %25 = arith.maximumf %23, %24 : vector<2x128xf32>
    %26 = arith.truncf %25 : vector<2x128xf32> to vector<2x128xbf16>
    %c0_19 = arith.constant 0 : index
    %c0_20 = arith.constant 0 : index
    %27 = vector.load %arg7[%c0_19, %c0_20] : memref<128x128xbf16, #tpu.memory_space<vmem>>, vector<128x128xbf16>
    %cst_21 = arith.constant dense<0.000000e+00> : vector<2x128xf32>
    %28 = tpu.matmul %26, %27, %cst_21 {dimension_numbers = #tpu.dot_dimension_numbers<[1], [0], [0], [1], [0, 0, 1, 1], [], []>} : vector<2x128xbf16>, vector<128x128xbf16>, vector<2x128xf32> -> vector<2x128xf32>
    %c0_22 = arith.constant 0 : index
    %c0_23 = arith.constant 0 : index
    %29 = vector.load %arg8[%c0_22, %c0_23] : memref<1x128xf32, #tpu.memory_space<vmem>>, vector<1x128xf32>
    %30 = vector.broadcast %29 : vector<1x128xf32> to vector<2x128xf32>
    %31 = arith.addf %28, %30 : vector<2x128xf32>
    %c0_24 = arith.constant 0 : index
    %c0_25 = arith.constant 0 : index
    %32 = vector.load %arg9[%c0_24, %c0_25] : memref<2x128xf32, #tpu.memory_space<vmem>>, vector<2x128xf32>
    tpu.vector_store %arg9[%c0_24, %c0_25], %31 {strides = array<i32>} : memref<2x128xf32, #tpu.memory_space<vmem>>, vector<2x128xf32>,
    return
  }
  func.func @transform_0(%arg0: i32) -> (i32, i32, i32) {
    %c0_i32 = arith.constant 0 : i32
    %c0_i32_0 = arith.constant 0 : i32
    %c0_i32_1 = arith.constant 0 : i32
    return %arg0, %c0_i32, %c0_i32_0 : i32, i32, i32
  }
  func.func @transform_1(%arg0: i32) -> (i32, i32) {
    %c0_i32 = arith.constant 0 : i32
    %c0_i32_0 = arith.constant 0 : i32
    %c0_i32_1 = arith.constant 0 : i32
    return %c0_i32, %c0_i32_0 : i32, i32
  }
  func.func @transform_2(%arg0: i32) -> (i32, i32) {
    %c0_i32 = arith.constant 0 : i32
    %c0_i32_0 = arith.constant 0 : i32
    %c0_i32_1 = arith.constant 0 : i32
    return %c0_i32, %c0_i32_0 : i32, i32
  }
  func.func @transform_3(%arg0: i32) -> (i32, i32) {
    %c0_i32 = arith.constant 0 : i32
    %c0_i32_0 = arith.constant 0 : i32
    %c0_i32_1 = arith.constant 0 : i32
    return %c0_i32, %c0_i32_0 : i32, i32
  }
  func.func @transform_4(%arg0: i32) -> (i32, i32) {
    %c0_i32 = arith.constant 0 : i32
    %c0_i32_0 = arith.constant 0 : i32
    %c0_i32_1 = arith.constant 0 : i32
    return %c0_i32, %c0_i32_0 : i32, i32
  }
  func.func @transform_5(%arg0: i32) -> (i32, i32) {
    %c0_i32 = arith.constant 0 : i32
    %c0_i32_0 = arith.constant 0 : i32
    %c0_i32_1 = arith.constant 0 : i32
    return %c0_i32, %c0_i32_0 : i32, i32
  }
  func.func @transform_6(%arg0: i32) -> (i32, i32) {
    %c0_i32 = arith.constant 0 : i32
    %c0_i32_0 = arith.constant 0 : i32
    %c0_i32_1 = arith.constant 0 : i32
    return %c0_i32, %c0_i32_0 : i32, i32
  }
  func.func @transform_7(%arg0: i32) -> (i32, i32) {
    %c0_i32 = arith.constant 0 : i32
    %c0_i32_0 = arith.constant 0 : i32
    %c0_i32_1 = arith.constant 0 : i32
    return %c0_i32, %c0_i32_0 : i32, i32
  }
  func.func @transform_8(%arg0: i32) -> (i32, i32) {
    %c0_i32 = arith.constant 0 : i32
    %c0_i32_0 = arith.constant 0 : i32
    return %arg0, %c0_i32 : i32, i32
  }
}

</mosaic_0001>

<llo_original>
// kernel: tpu_custom_call.1
$region0: #{tpu_custom_call.1}
  #allocation0 [shape = 'u32[]', space=smem, size = 0x4, offset = 0x4, fixed_abs, tag = 'smem constant byte address 0x4 - core index']
  #allocation1 [shape = 'u32[72,128]{1,0:T(1,128)}', space=vmem, size = 0x9000, scoped, tag = 'internal scratch']
  %s0 = inlined_call_operand.hbm [shape: bf16[2,8,32], index: 0, kind: input, shape index: {}]
  %s1 = inlined_call_operand.hbm [shape: bf16[32,512], index: 1, kind: input, shape index: {}]
  %s2 = inlined_call_operand.hbm [shape: bf16[32,512], index: 2, kind: input, shape index: {}]
  %s3 = inlined_call_operand.hbm [shape: f32[1,512], index: 3, kind: input, shape index: {}]
  %s4 = inlined_call_operand.hbm [shape: bf16[512,128], index: 4, kind: input, shape index: {}]
  %s5 = inlined_call_operand.vmem [shape: f32[1,128], index: 5, kind: input, shape index: {}]
  %s6 = inlined_call_operand.hbm [shape: bf16[128,128], index: 6, kind: input, shape index: {}]
  %s7 = inlined_call_operand.vmem [shape: f32[1,128], index: 7, kind: input, shape index: {}]
  %s8 = inlined_call_operand.hbm [shape: f32[2,128], index: 8, kind: output, shape index: {}]
  %s9 = sld [smem:[#allocation0]]
  $region66: #{tpu_custom_call.1} parent=0
    _
  %s11 = ssub.s32 1, %s9
  %s12 = scalar_select 0, %s11, %s9
  $region1: #{tpu_custom_call.1} parent=0
    #allocation2 [shape = 'u8[4096]{0}', space=vmem, size = 0x1000, scoped, tag = 'input window, operand 0, single buffered']
    #allocation3 [shape = 's32[1]{0}', space=sflag, size = 0x4, scoped, tag = 'scoped memory for tpu_custom_call.1']
    #allocation4 [shape = 's32[1]{0}', space=sflag, size = 0x4, scoped, tag = 'scoped memory for tpu_custom_call.1']
    #allocation5 [shape = 'u8[32768]{0}', space=vmem, size = 0x8000, scoped, tag = 'input window, operand 1, single buffered']
    #allocation6 [shape = 's32[1]{0}', space=sflag, size = 0x4, scoped, tag = 'scoped memory for tpu_custom_call.1']
    #allocation7 [shape = 'u8[32768]{0}', space=vmem, size = 0x8000, scoped, tag = 'input window, operand 2, single buffered']
    #allocation8 [shape = 'u8[2048]{0}', space=vmem, size = 0x800, scoped, tag = 'input window, operand 3, single buffered']
    #allocation9 [shape = 's32[1]{0}', space=sflag, size = 0x4, scoped, tag = 'scoped memory for tpu_custom_call.1']
    #allocation10 [shape = 'u8[131072]{0}', space=vmem, size = 0x20000, scoped, tag = 'input window, operand 4, single buffered']
    #allocation11 [shape = 'u8[32768]{0}', space=vmem, size = 0x8000, scoped, tag = 'input window, operand 6, single buffered']
    #allocation12 [shape = 's32[1]{0}', space=sflag, size = 0x4, scoped, tag = 'scoped memory for tpu_custom_call.1']
    #allocation13 [shape = 'u8[1024]{0}', space=vmem, size = 0x400, scoped, tag = 'output window, operand 0, single buffered']
    %13 = vsyncpa [#allocation3], 0
    %14 = vsyncpa [#allocation6], 0
    %15 = vsyncpa [#allocation9], 0
    %16 = vsyncpa [#allocation12], 0
    %17 = vsyncpa [#allocation4], 0
    // Predicated region
    $region2: #{tpu_custom_call.1} parent=1 // pred_check
      _
    $region3: #{tpu_custom_call.1} parent=1 // pred_check_branch
      %19 = sbr.rel (0) target = $region5
    $region4: #{tpu_custom_call.1} parent=1 // pred_region
      %21 = vsyncadd [#allocation3], 0
      %s22 = sshll.u32 %s0, 4
      %s23 = int_to_ptr.hbm [resolvable:$true] %s22
      %s24 = sshll.u32 [#allocation2], 4
      %s25 = int_to_ptr.vmem [resolvable:$true] %s24
      %30 = dma.hbm_to_vmem [thread:$0]  %s23, 128, %s25, [#allocation3], 64, 64, 4
    $region5: #{tpu_custom_call.1} parent=1 // pred_fallthru
      _
    // Predicated region
    $region6: #{tpu_custom_call.1} parent=1 // pred_check
      _
    $region7: #{tpu_custom_call.1} parent=1 // pred_check_branch
      %32 = sbr.rel (0) target = $region9
    $region8: #{tpu_custom_call.1} parent=1 // pred_region
      %34 = vsyncadd [#allocation6], 0
      %s35 = sshll.u32 %s1, 4
      %s36 = int_to_ptr.hbm [resolvable:$true] %s35
      %s37 = sshll.u32 [#allocation5], 4
      %s38 = int_to_ptr.vmem [resolvable:$true] %s37
      %43 = dma.hbm_to_vmem [thread:$0]  %s36, 1024, %s38, [#allocation6], 256, 256, 16
    $region9: #{tpu_custom_call.1} parent=1 // pred_fallthru
      _
    // Predicated region
    $region10: #{tpu_custom_call.1} parent=1 // pred_check
      _
    $region11: #{tpu_custom_call.1} parent=1 // pred_check_branch
      %45 = sbr.rel (0) target = $region13
    $region12: #{tpu_custom_call.1} parent=1 // pred_region
      %47 = vsyncadd [#allocation6], 0
      %s48 = sshll.u32 %s2, 4
      %s49 = int_to_ptr.hbm [resolvable:$true] %s48
      %s50 = sshll.u32 [#allocation7], 4
      %s51 = int_to_ptr.vmem [resolvable:$true] %s50
      %56 = dma.hbm_to_vmem [thread:$0]  %s49, 1024, %s51, [#allocation6], 256, 256, 16
    $region13: #{tpu_custom_call.1} parent=1 // pred_fallthru
      _
    // Predicated region
    $region14: #{tpu_custom_call.1} parent=1 // pred_check
      _
    $region15: #{tpu_custom_call.1} parent=1 // pred_check_branch
      %58 = sbr.rel (0) target = $region17
    $region16: #{tpu_custom_call.1} parent=1 // pred_region
      %60 = vsyncadd [#allocation9], 0
      %s62 = sshll.u32 %s3, 4
      %s63 = int_to_ptr.hbm [resolvable:$true] %s62
      %s64 = sshll.u32 [#allocation8], 4
      %s65 = int_to_ptr.vmem [resolvable:$true] %s64
      %67 = dma.hbm_to_vmem [thread:$0]  %s63, 64, %s65, [#allocation9]
    $region17: #{tpu_custom_call.1} parent=1 // pred_fallthru
      _
    // Predicated region
    $region18: #{tpu_custom_call.1} parent=1 // pred_check
      _
    $region19: #{tpu_custom_call.1} parent=1 // pred_check_branch
      %69 = sbr.rel (0) target = $region21
    $region20: #{tpu_custom_call.1} parent=1 // pred_region
      %71 = vsyncadd [#allocation9], 0
      %s72 = sshll.u32 %s4, 4
      %s73 = int_to_ptr.hbm [resolvable:$true] %s72
      %s74 = sshll.u32 [#allocation10], 4
      %s75 = int_to_ptr.vmem [resolvable:$true] %s74
      %80 = dma.hbm_to_vmem [thread:$0]  %s73, 4096, %s75, [#allocation9], 64, 64, 4
    $region21: #{tpu_custom_call.1} parent=1 // pred_fallthru
      _
    // Predicated region
    $region22: #{tpu_custom_call.1} parent=1 // pred_check
      _
    $region23: #{tpu_custom_call.1} parent=1 // pred_check_branch
      %82 = sbr.rel (0) target = $region25
    $region24: #{tpu_custom_call.1} parent=1 // pred_region
      _
    $region25: #{tpu_custom_call.1} parent=1 // pred_fallthru
      _
    // Predicated region
    $region26: #{tpu_custom_call.1} parent=1 // pred_check
      _
    $region27: #{tpu_custom_call.1} parent=1 // pred_check_branch
      %84 = sbr.rel (0) target = $region29
    $region28: #{tpu_custom_call.1} parent=1 // pred_region
      %86 = vsyncadd [#allocation12], 0
      %s87 = sshll.u32 %s6, 4
      %s88 = int_to_ptr.hbm [resolvable:$true] %s87
      %s89 = sshll.u32 [#allocation11], 4
      %s90 = int_to_ptr.vmem [resolvable:$true] %s89
      %95 = dma.hbm_to_vmem [thread:$0]  %s88, 1024, %s90, [#allocation12], 64, 64, 4
    $region29: #{tpu_custom_call.1} parent=1 // pred_fallthru
      _
    // Predicated region
    $region30: #{tpu_custom_call.1} parent=1 // pred_check
      _
    $region31: #{tpu_custom_call.1} parent=1 // pred_check_branch
      %97 = sbr.rel (0) target = $region33
    $region32: #{tpu_custom_call.1} parent=1 // pred_region
      _
    $region33: #{tpu_custom_call.1} parent=1 // pred_fallthru
      _
    // Predicated region
    $region34: #{tpu_custom_call.1} parent=1 // pred_check
      _
    $region35: #{tpu_custom_call.1} parent=1 // pred_check_branch
      %99 = sbr.rel (0) target = $region37
    $region36: #{tpu_custom_call.1} parent=1 // pred_region
      %101 = dma.done [#allocation3], 128
    $region37: #{tpu_custom_call.1} parent=1 // pred_fallthru
      _
    // Predicated region
    $region38: #{tpu_custom_call.1} parent=1 // pred_check
      _
    $region39: #{tpu_custom_call.1} parent=1 // pred_check_branch
      %103 = sbr.rel (0) target = $region41
    $region40: #{tpu_custom_call.1} parent=1 // pred_region
      %105 = dma.done [#allocation6], 1024
    $region41: #{tpu_custom_call.1} parent=1 // pred_fallthru
      _
    // Predicated region
    $region42: #{tpu_custom_call.1} parent=1 // pred_check
      _
    $region43: #{tpu_custom_call.1} parent=1 // pred_check_branch
      %107 = sbr.rel (0) target = $region45
    $region44: #{tpu_custom_call.1} parent=1 // pred_region
      %109 = dma.done [#allocation6], 1024
    $region45: #{tpu_custom_call.1} parent=1 // pred_fallthru
      _
    // Predicated region
    $region46: #{tpu_custom_call.1} parent=1 // pred_check
      _
    $region47: #{tpu_custom_call.1} parent=1 // pred_check_branch
      %111 = sbr.rel (0) target = $region49
    $region48: #{tpu_custom_call.1} parent=1 // pred_region
      %113 = dma.done [#allocation9], 64
    $region49: #{tpu_custom_call.1} parent=1 // pred_fallthru
      _
    // Predicated region
    $region50: #{tpu_custom_call.1} parent=1 // pred_check
      _
    $region51: #{tpu_custom_call.1} parent=1 // pred_check_branch
      %115 = sbr.rel (0) target = $region53
    $region52: #{tpu_custom_call.1} parent=1 // pred_region
      %117 = dma.done [#allocation9], 4096
    $region53: #{tpu_custom_call.1} parent=1 // pred_fallthru
      _
    // Predicated region
    $region54: #{tpu_custom_call.1} parent=1 // pred_check
      _
    $region55: #{tpu_custom_call.1} parent=1 // pred_check_branch
      %119 = sbr.rel (0) target = $region57
    $region56: #{tpu_custom_call.1} parent=1 // pred_region
      %121 = dma.done [#allocation12], 1024
    $region57: #{tpu_custom_call.1} parent=1 // pred_fallthru
      _
    %v123 = vld [vmem:[#allocation2] sm:$0xf]
    %v124 = vld [vmem:[#allocation2 + $0x4] sm:$0xf]
    %v125 = vunpack.c.l.bf16 %v123
    %v126 = vunpack.c.l.bf16 %v124
    %vm127 = vcmask 261120
    %v128 = vsel %vm127, %v125, 0.0
    %v129 = vrot.slane %v128, 4
    %v130 = vadd.f32 %v128, %v129
    %v131 = vrot.slane %v130, 2
    %v132 = vadd.f32 %v130, %v131
    %v133 = vrot.slane %v132, 1
    %v134 = vadd.f32 %v132, %v133
    %v135 = vsel %vm127, %v126, 0.0
    %v136 = vrot.slane %v135, 4
    %v137 = vadd.f32 %v135, %v136
    %v138 = vrot.slane %v137, 2
    %v139 = vadd.f32 %v137, %v138
    %v140 = vrot.slane %v139, 1
    %v141 = vadd.f32 %v139, %v140
    %v142 = vmul.f32 %v134, 0.125
    %v143 = vmul.f32 %v141, 0.125
    %v144 = vpack.c.bf16 %v142, %v142
    %v145 = vpack.c.bf16 %v143, %v143
    %v146 = vsel %vm127, %v125, -inf
    %v147 = vrot.slane %v146, 4
    %v148 = vmax.f32 %v146, %v147
    %v149 = vrot.slane %v148, 2
    %v150 = vmax.f32 %v148, %v149
    %v151 = vrot.slane %v150, 1
    %v152 = vmax.f32 %v150, %v151
    %v153 = vsel %vm127, %v126, -inf
    %v154 = vrot.slane %v153, 4
    %v155 = vmax.f32 %v153, %v154
    %v156 = vrot.slane %v155, 2
    %v157 = vmax.f32 %v155, %v156
    %v158 = vrot.slane %v157, 1
    %v159 = vmax.f32 %v157, %v158
    %v160 = vpack.c.bf16 %v152, %v152
    %v161 = vpack.c.bf16 %v159, %v159
    %v162 = vld [vmem:[#allocation5] sm:$0xff]
    %v163 = vld [vmem:[#allocation5 + $0x8] sm:$0xff]
    %v164 = vld [vmem:[#allocation5 + $0x10] sm:$0xff]
    %v165 = vld [vmem:[#allocation5 + $0x18] sm:$0xff]
    %v166 = vld [vmem:[#allocation5 + $0x20] sm:$0xff]
    %v167 = vld [vmem:[#allocation5 + $0x28] sm:$0xff]
    %v168 = vld [vmem:[#allocation5 + $0x30] sm:$0xff]
    %v169 = vld [vmem:[#allocation5 + $0x38] sm:$0xff]
    %v170 = vld [vmem:[#allocation7] sm:$0xff]
    %v171 = vld [vmem:[#allocation7 + $0x8] sm:$0xff]
    %v172 = vld [vmem:[#allocation7 + $0x10] sm:$0xff]
    %v173 = vld [vmem:[#allocation7 + $0x18] sm:$0xff]
    %v174 = vld [vmem:[#allocation7 + $0x20] sm:$0xff]
    %v175 = vld [vmem:[#allocation7 + $0x28] sm:$0xff]
    %v176 = vld [vmem:[#allocation7 + $0x30] sm:$0xff]
    %v177 = vld [vmem:[#allocation7 + $0x38] sm:$0xff]
    %v180 = vunpack.c.l.b16 %v160
    %v181 = vunpack.c.l.b16 %v161
    %vm182 = vcmask 1041409
    %v183 = vsel %vm182, %v181, %v180
    %v184 = vpack.c.b16 %v183, %v183
    %v193 = vunpack.c.l.b16 %v170
    %v194 = vunpack.c.h.b16 %v170
    %v195 = vunpack.c.l.b16 %v171
    %v196 = vunpack.c.h.b16 %v171
    %v197 = vunpack.c.l.b16 %v172
    %v198 = vunpack.c.h.b16 %v172
    %v199 = vunpack.c.l.b16 %v173
    %v200 = vunpack.c.h.b16 %v173
    %v201 = vunpack.c.l.b16 %v174
    %v202 = vunpack.c.h.b16 %v174
    %v203 = vunpack.c.l.b16 %v175
    %v204 = vunpack.c.h.b16 %v175
    %v205 = vunpack.c.l.b16 %v176
    %v206 = vunpack.c.h.b16 %v176
    %v207 = vunpack.c.l.b16 %v177
    %v208 = vunpack.c.h.b16 %v177
    %v209 = vpack.c.b16 %v197, %v193
    %v210 = vpack.c.b16 %v198, %v194
    %v211 = vpack.c.b16 %v199, %v195
    %v212 = vpack.c.b16 %v200, %v196
    %v213 = vpack.c.b16 %v205, %v201
    %v214 = vpack.c.b16 %v206, %v202
    %v215 = vpack.c.b16 %v207, %v203
    %v216 = vpack.c.b16 %v208, %v204
    %v226 = vsel %vm127, %v184, 0
    %228 = vmatpush.bf16.msra.mxu0 0
    %229 = vmatpush.bf16.msra.mxu0 0
    %230 = vmatpush.bf16.msra.mxu0 0
    %231 = vmatpush.bf16.msra.mxu0 0
    %232 = vmatpush.bf16.msra.mxu0 0
    %233 = vmatpush.bf16.msra.mxu0 0
    %234 = vmatpush.bf16.msra.mxu0 %v213
    %235 = vmatpush.bf16.msra.mxu0 %v209
    %236 = vmatmul.bf16.gmra.mxu0 %v226
    %v237 = vpop.f32.mrf.mxu0
    %v238 = vadd.f32 0.0, %v237
    %v239 = vpop.f32.mrf.mxu0
    %240 = vdwg.mxu0
    %241 = vmatpush.bf16.msra.mxu0 0
    %242 = vmatpush.bf16.msra.mxu0 0
    %243 = vmatpush.bf16.msra.mxu0 0
    %244 = vmatpush.bf16.msra.mxu0 0
    %245 = vmatpush.bf16.msra.mxu0 0
    %246 = vmatpush.bf16.msra.mxu0 0
    %247 = vmatpush.bf16.msra.mxu0 %v214
    %248 = vmatpush.bf16.msra.mxu0 %v210
    %249 = vmatmul.bf16.gmra.mxu0 %v226
    %v250 = vpop.f32.mrf.mxu0
    %v251 = vadd.f32 0.0, %v250
    %v252 = vpop.f32.mrf.mxu0
    %253 = vdwg.mxu0
    %254 = vmatpush.bf16.msra.mxu0 0
    %255 = vmatpush.bf16.msra.mxu0 0
    %256 = vmatpush.bf16.msra.mxu0 0
    %257 = vmatpush.bf16.msra.mxu0 0
    %258 = vmatpush.bf16.msra.mxu0 0
    %259 = vmatpush.bf16.msra.mxu0 0
    %260 = vmatpush.bf16.msra.mxu0 %v215
    %261 = vmatpush.bf16.msra.mxu0 %v211
    %262 = vmatmul.bf16.gmra.mxu0 %v226
    %v263 = vpop.f32.mrf.mxu0
    %v264 = vadd.f32 0.0, %v263
    %v265 = vpop.f32.mrf.mxu0
    %266 = vdwg.mxu0
    %267 = vmatpush.bf16.msra.mxu0 0
    %268 = vmatpush.bf16.msra.mxu0 0
    %269 = vmatpush.bf16.msra.mxu0 0
    %270 = vmatpush.bf16.msra.mxu0 0
    %271 = vmatpush.bf16.msra.mxu0 0
    %272 = vmatpush.bf16.msra.mxu0 0
    %273 = vmatpush.bf16.msra.mxu0 %v216
    %274 = vmatpush.bf16.msra.mxu0 %v212
    %275 = vmatmul.bf16.gmra.mxu0 %v226
    %v276 = vpop.f32.mrf.mxu0
    %v277 = vadd.f32 0.0, %v276
    %v278 = vpop.f32.mrf.mxu0
    %279 = vdwg.mxu0
    %v282 = vunpack.c.l.b16 %v144
    %v283 = vunpack.c.l.b16 %v145
    %v284 = vsel %vm182, %v283, %v282
    %v285 = vpack.c.b16 %v284, %v284
    %v294 = vunpack.c.l.b16 %v162
    %v295 = vunpack.c.h.b16 %v162
    %v296 = vunpack.c.l.b16 %v163
    %v297 = vunpack.c.h.b16 %v163
    %v298 = vunpack.c.l.b16 %v164
    %v299 = vunpack.c.h.b16 %v164
    %v300 = vunpack.c.l.b16 %v165
    %v301 = vunpack.c.h.b16 %v165
    %v302 = vunpack.c.l.b16 %v166
    %v303 = vunpack.c.h.b16 %v166
    %v304 = vunpack.c.l.b16 %v167
    %v305 = vunpack.c.h.b16 %v167
    %v306 = vunpack.c.l.b16 %v168
    %v307 = vunpack.c.h.b16 %v168
    %v308 = vunpack.c.l.b16 %v169
    %v309 = vunpack.c.h.b16 %v169
    %v310 = vpack.c.b16 %v298, %v294
    %v311 = vpack.c.b16 %v299, %v295
    %v312 = vpack.c.b16 %v300, %v296
    %v313 = vpack.c.b16 %v301, %v297
    %v314 = vpack.c.b16 %v306, %v302
    %v315 = vpack.c.b16 %v307, %v303
    %v316 = vpack.c.b16 %v308, %v304
    %v317 = vpack.c.b16 %v309, %v305
    %v327 = vsel %vm127, %v285, 0
    %329 = vmatpush.bf16.msra.mxu0 0
    %330 = vmatpush.bf16.msra.mxu0 0
    %331 = vmatpush.bf16.msra.mxu0 0
    %332 = vmatpush.bf16.msra.mxu0 0
    %333 = vmatpush.bf16.msra.mxu0 0
    %334 = vmatpush.bf16.msra.mxu0 0
    %335 = vmatpush.bf16.msra.mxu0 %v314
    %336 = vmatpush.bf16.msra.mxu0 %v310
    %337 = vmatmul.bf16.gmra.mxu0 %v327
    %v338 = vpop.f32.mrf.mxu0
    %v339 = vadd.f32 %v238, %v338
    %v340 = vpop.f32.mrf.mxu0
    %341 = vdwg.mxu0
    %342 = vmatpush.bf16.msra.mxu0 0
    %343 = vmatpush.bf16.msra.mxu0 0
    %344 = vmatpush.bf16.msra.mxu0 0
    %345 = vmatpush.bf16.msra.mxu0 0
    %346 = vmatpush.bf16.msra.mxu0 0
    %347 = vmatpush.bf16.msra.mxu0 0
    %348 = vmatpush.bf16.msra.mxu0 %v315
    %349 = vmatpush.bf16.msra.mxu0 %v311
    %350 = vmatmul.bf16.gmra.mxu0 %v327
    %v351 = vpop.f32.mrf.mxu0
    %v352 = vadd.f32 %v251, %v351
    %v353 = vpop.f32.mrf.mxu0
    %354 = vdwg.mxu0
    %355 = vmatpush.bf16.msra.mxu0 0
    %356 = vmatpush.bf16.msra.mxu0 0
    %357 = vmatpush.bf16.msra.mxu0 0
    %358 = vmatpush.bf16.msra.mxu0 0
    %359 = vmatpush.bf16.msra.mxu0 0
    %360 = vmatpush.bf16.msra.mxu0 0
    %361 = vmatpush.bf16.msra.mxu0 %v316
    %362 = vmatpush.bf16.msra.mxu0 %v312
    %363 = vmatmul.bf16.gmra.mxu0 %v327
    %v364 = vpop.f32.mrf.mxu0
    %v365 = vadd.f32 %v264, %v364
    %v366 = vpop.f32.mrf.mxu0
    %367 = vdwg.mxu0
    %368 = vmatpush.bf16.msra.mxu0 0
    %369 = vmatpush.bf16.msra.mxu0 0
    %370 = vmatpush.bf16.msra.mxu0 0
    %371 = vmatpush.bf16.msra.mxu0 0
    %372 = vmatpush.bf16.msra.mxu0 0
    %373 = vmatpush.bf16.msra.mxu0 0
    %374 = vmatpush.bf16.msra.mxu0 %v317
    %375 = vmatpush.bf16.msra.mxu0 %v313
    %376 = vmatmul.bf16.gmra.mxu0 %v327
    %v377 = vpop.f32.mrf.mxu0
    %v378 = vadd.f32 %v277, %v377
    %v379 = vpop.f32.mrf.mxu0
    %380 = vdwg.mxu0
    %v381 = vld [vmem:[#allocation8] sm:$0xf]
    %v383 = vperm.slane %v381, 0
    %v384 = vperm.slane %v381, 1
    %v385 = vperm.slane %v381, 2
    %v386 = vperm.slane %v381, 3
    %v391 = vadd.f32 %v339, %v383
    %v392 = vadd.f32 %v352, %v384
    %v393 = vadd.f32 %v365, %v385
    %v394 = vadd.f32 %v378, %v386
    %v395 = vmax.f32 %v391, 0.0
    %v396 = vmax.f32 %v392, 0.0
    %v397 = vmax.f32 %v393, 0.0
    %v398 = vmax.f32 %v394, 0.0
    %v399 = vpack.c.bf16 %v395, %v395
    %v400 = vpack.c.bf16 %v396, %v396
    %v401 = vpack.c.bf16 %v397, %v397
    %v402 = vpack.c.bf16 %v398, %v398
    %v403 = vld [vmem:[#allocation10] sm:$0xf]
    %v404 = vld [vmem:[#allocation10 + $0x4] sm:$0xf]
    %v405 = vld [vmem:[#allocation10 + $0x8] sm:$0xf]
    %v406 = vld [vmem:[#allocation10 + $0xc] sm:$0xf]
    %v407 = vld [vmem:[#allocation10 + $0x10] sm:$0xf]
    %v408 = vld [vmem:[#allocation10 + $0x14] sm:$0xf]
    %v409 = vld [vmem:[#allocation10 + $0x18] sm:$0xf]
    %v410 = vld [vmem:[#allocation10 + $0x1c] sm:$0xf]
    %v411 = vld [vmem:[#allocation10 + $0x20] sm:$0xf]
    %v412 = vld [vmem:[#allocation10 + $0x24] sm:$0xf]
    %v413 = vld [vmem:[#allocation10 + $0x28] sm:$0xf]
    %v414 = vld [vmem:[#allocation10 + $0x2c] sm:$0xf]
    %v415 = vld [vmem:[#allocation10 + $0x30] sm:$0xf]
    %v416 = vld [vmem:[#allocation10 + $0x34] sm:$0xf]
    %v417 = vld [vmem:[#allocation10 + $0x38] sm:$0xf]
    %v418 = vld [vmem:[#allocation10 + $0x3c] sm:$0xf]
    %v419 = vld [vmem:[#allocation10 + $0x40] sm:$0xf]
    %v420 = vld [vmem:[#allocation10 + $0x44] sm:$0xf]
    %v421 = vld [vmem:[#allocation10 + $0x48] sm:$0xf]
    %v422 = vld [vmem:[#allocation10 + $0x4c] sm:$0xf]
    %v423 = vld [vmem:[#allocation10 + $0x50] sm:$0xf]
    %v424 = vld [vmem:[#allocation10 + $0x54] sm:$0xf]
    %v425 = vld [vmem:[#allocation10 + $0x58] sm:$0xf]
    %v426 = vld [vmem:[#allocation10 + $0x5c] sm:$0xf]
    %v427 = vld [vmem:[#allocation10 + $0x60] sm:$0xf]
    %v428 = vld [vmem:[#allocation10 + $0x64] sm:$0xf]
    %v429 = vld [vmem:[#allocation10 + $0x68] sm:$0xf]
    %v430 = vld [vmem:[#allocation10 + $0x6c] sm:$0xf]
    %v431 = vld [vmem:[#allocation10 + $0x70] sm:$0xf]
    %v432 = vld [vmem:[#allocation10 + $0x74] sm:$0xf]
    %v433 = vld [vmem:[#allocation10 + $0x78] sm:$0xf]
    %v434 = vld [vmem:[#allocation10 + $0x7c] sm:$0xf]
    %v435 = vld [vmem:[#allocation10 + $0x80] sm:$0xf]
    %v436 = vld [vmem:[#allocation10 + $0x84] sm:$0xf]
    %v437 = vld [vmem:[#allocation10 + $0x88] sm:$0xf]
    %v438 = vld [vmem:[#allocation10 + $0x8c] sm:$0xf]
    %v439 = vld [vmem:[#allocation10 + $0x90] sm:$0xf]
    %v440 = vld [vmem:[#allocation10 + $0x94] sm:$0xf]
    %v441 = vld [vmem:[#allocation10 + $0x98] sm:$0xf]
    %v442 = vld [vmem:[#allocation10 + $0x9c] sm:$0xf]
    %v443 = vld [vmem:[#allocation10 + $0xa0] sm:$0xf]
    %v444 = vld [vmem:[#allocation10 + $0xa4] sm:$0xf]
    %v445 = vld [vmem:[#allocation10 + $0xa8] sm:$0xf]
    %v446 = vld [vmem:[#allocation10 + $0xac] sm:$0xf]
    %v447 = vld [vmem:[#allocation10 + $0xb0] sm:$0xf]
    %v448 = vld [vmem:[#allocation10 + $0xb4] sm:$0xf]
    %v449 = vld [vmem:[#allocation10 + $0xb8] sm:$0xf]
    %v450 = vld [vmem:[#allocation10 + $0xbc] sm:$0xf]
    %v451 = vld [vmem:[#allocation10 + $0xc0] sm:$0xf]
    %v452 = vld [vmem:[#allocation10 + $0xc4] sm:$0xf]
    %v453 = vld [vmem:[#allocation10 + $0xc8] sm:$0xf]
    %v454 = vld [vmem:[#allocation10 + $0xcc] sm:$0xf]
    %v455 = vld [vmem:[#allocation10 + $0xd0] sm:$0xf]
    %v456 = vld [vmem:[#allocation10 + $0xd4] sm:$0xf]
    %v457 = vld [vmem:[#allocation10 + $0xd8] sm:$0xf]
    %v458 = vld [vmem:[#allocation10 + $0xdc] sm:$0xf]
    %v459 = vld [vmem:[#allocation10 + $0xe0] sm:$0xf]
    %v460 = vld [vmem:[#allocation10 + $0xe4] sm:$0xf]
    %v461 = vld [vmem:[#allocation10 + $0xe8] sm:$0xf]
    %v462 = vld [vmem:[#allocation10 + $0xec] sm:$0xf]
    %v463 = vld [vmem:[#allocation10 + $0xf0] sm:$0xf]
    %v464 = vld [vmem:[#allocation10 + $0xf4] sm:$0xf]
    %v465 = vld [vmem:[#allocation10 + $0xf8] sm:$0xf]
    %v466 = vld [vmem:[#allocation10 + $0xfc] sm:$0xf]
    %v467 = vld [vmem:[%s5] sm:$0x1]
    %v469 = vperm.slane %v467, 0
    %v535 = vunpack.c.l.b16 %v403
    %v536 = vunpack.c.l.b16 %v404
    %v537 = vunpack.c.l.b16 %v405
    %v538 = vunpack.c.l.b16 %v406
    %v539 = vunpack.c.l.b16 %v407
    %v540 = vunpack.c.l.b16 %v408
    %v541 = vunpack.c.l.b16 %v409
    %v542 = vunpack.c.l.b16 %v410
    %v543 = vunpack.c.l.b16 %v411
    %v544 = vunpack.c.l.b16 %v412
    %v545 = vunpack.c.l.b16 %v413
    %v546 = vunpack.c.l.b16 %v414
    %v547 = vunpack.c.l.b16 %v415
    %v548 = vunpack.c.l.b16 %v416
    %v549 = vunpack.c.l.b16 %v417
    %v550 = vunpack.c.l.b16 %v418
    %v551 = vunpack.c.l.b16 %v419
    %v552 = vunpack.c.l.b16 %v420
    %v553 = vunpack.c.l.b16 %v421
    %v554 = vunpack.c.l.b16 %v422
    %v555 = vunpack.c.l.b16 %v423
    %v556 = vunpack.c.l.b16 %v424
    %v557 = vunpack.c.l.b16 %v425
    %v558 = vunpack.c.l.b16 %v426
    %v559 = vunpack.c.l.b16 %v427
    %v560 = vunpack.c.l.b16 %v428
    %v561 = vunpack.c.l.b16 %v429
    %v562 = vunpack.c.l.b16 %v430
    %v563 = vunpack.c.l.b16 %v431
    %v564 = vunpack.c.l.b16 %v432
    %v565 = vunpack.c.l.b16 %v433
    %v566 = vunpack.c.l.b16 %v434
    %v567 = vunpack.c.l.b16 %v435
    %v568 = vunpack.c.l.b16 %v436
    %v569 = vunpack.c.l.b16 %v437
    %v570 = vunpack.c.l.b16 %v438
    %v571 = vunpack.c.l.b16 %v439
    %v572 = vunpack.c.l.b16 %v440
    %v573 = vunpack.c.l.b16 %v441
    %v574 = vunpack.c.l.b16 %v442
    %v575 = vunpack.c.l.b16 %v443
    %v576 = vunpack.c.l.b16 %v444
    %v577 = vunpack.c.l.b16 %v445
    %v578 = vunpack.c.l.b16 %v446
    %v579 = vunpack.c.l.b16 %v447
    %v580 = vunpack.c.l.b16 %v448
    %v581 = vunpack.c.l.b16 %v449
    %v582 = vunpack.c.l.b16 %v450
    %v583 = vunpack.c.l.b16 %v451
    %v584 = vunpack.c.l.b16 %v452
    %v585 = vunpack.c.l.b16 %v453
    %v586 = vunpack.c.l.b16 %v454
    %v587 = vunpack.c.l.b16 %v455
    %v588 = vunpack.c.l.b16 %v456
    %v589 = vunpack.c.l.b16 %v457
    %v590 = vunpack.c.l.b16 %v458
    %v591 = vunpack.c.l.b16 %v459
    %v592 = vunpack.c.l.b16 %v460
    %v593 = vunpack.c.l.b16 %v461
    %v594 = vunpack.c.l.b16 %v462
    %v595 = vunpack.c.l.b16 %v463
    %v596 = vunpack.c.l.b16 %v464
    %v597 = vunpack.c.l.b16 %v465
    %v598 = vunpack.c.l.b16 %v466
    %v599 = vpack.c.b16 %v536, %v535
    %v600 = vpack.c.b16 %v538, %v537
    %v601 = vpack.c.b16 %v540, %v539
    %v602 = vpack.c.b16 %v542, %v541
    %v603 = vpack.c.b16 %v544, %v543
    %v604 = vpack.c.b16 %v546, %v545
    %v605 = vpack.c.b16 %v548, %v547
    %v606 = vpack.c.b16 %v550, %v549
    %v607 = vpack.c.b16 %v552, %v551
    %v608 = vpack.c.b16 %v554, %v553
    %v609 = vpack.c.b16 %v556, %v555
    %v610 = vpack.c.b16 %v558, %v557
    %v611 = vpack.c.b16 %v560, %v559
    %v612 = vpack.c.b16 %v562, %v561
    %v613 = vpack.c.b16 %v564, %v563
    %v614 = vpack.c.b16 %v566, %v565
    %v615 = vpack.c.b16 %v568, %v567
    %v616 = vpack.c.b16 %v570, %v569
    %v617 = vpack.c.b16 %v572, %v571
    %v618 = vpack.c.b16 %v574, %v573
    %v619 = vpack.c.b16 %v576, %v575
    %v620 = vpack.c.b16 %v578, %v577
    %v621 = vpack.c.b16 %v580, %v579
    %v622 = vpack.c.b16 %v582, %v581
    %v623 = vpack.c.b16 %v584, %v583
    %v624 = vpack.c.b16 %v586, %v585
    %v625 = vpack.c.b16 %v588, %v587
    %v626 = vpack.c.b16 %v590, %v589
    %v627 = vpack.c.b16 %v592, %v591
    %v628 = vpack.c.b16 %v594, %v593
    %v629 = vpack.c.b16 %v596, %v595
    %v630 = vpack.c.b16 %v598, %v597
    %663 = vmatpush.bf16.msra.mxu0 %v606
    %664 = vmatpush.bf16.msra.mxu0 %v605
    %665 = vmatpush.bf16.msra.mxu0 %v604
    %666 = vmatpush.bf16.msra.mxu0 %v603
    %667 = vmatpush.bf16.msra.mxu0 %v602
    %668 = vmatpush.bf16.msra.mxu0 %v601
    %669 = vmatpush.bf16.msra.mxu0 %v600
    %670 = vmatpush.bf16.msra.mxu0 %v599
    %671 = vmatmul.bf16.gmra.mxu0 %v399
    %v672 = vpop.f32.mrf.mxu0
    %v673 = vadd.f32 %v469, %v672
    %v674 = vpop.f32.mrf.mxu0
    %675 = vdwg.mxu0
    %676 = vmatpush.bf16.msra.mxu0 %v614
    %677 = vmatpush.bf16.msra.mxu0 %v613
    %678 = vmatpush.bf16.msra.mxu0 %v612
    %679 = vmatpush.bf16.msra.mxu0 %v611
    %680 = vmatpush.bf16.msra.mxu0 %v610
    %681 = vmatpush.bf16.msra.mxu0 %v609
    %682 = vmatpush.bf16.msra.mxu0 %v608
    %683 = vmatpush.bf16.msra.mxu0 %v607
    %684 = vmatmul.bf16.gmra.mxu0 %v400
    %v685 = vpop.f32.mrf.mxu0
    %v686 = vadd.f32 %v673, %v685
    %v687 = vpop.f32.mrf.mxu0
    %688 = vdwg.mxu0
    %689 = vmatpush.bf16.msra.mxu0 %v622
    %690 = vmatpush.bf16.msra.mxu0 %v621
    %691 = vmatpush.bf16.msra.mxu0 %v620
    %692 = vmatpush.bf16.msra.mxu0 %v619
    %693 = vmatpush.bf16.msra.mxu0 %v618
    %694 = vmatpush.bf16.msra.mxu0 %v617
    %695 = vmatpush.bf16.msra.mxu0 %v616
    %696 = vmatpush.bf16.msra.mxu0 %v615
    %697 = vmatmul.bf16.gmra.mxu0 %v401
    %v698 = vpop.f32.mrf.mxu0
    %v699 = vadd.f32 %v686, %v698
    %v700 = vpop.f32.mrf.mxu0
    %701 = vdwg.mxu0
    %702 = vmatpush.bf16.msra.mxu0 %v630
    %703 = vmatpush.bf16.msra.mxu0 %v629
    %704 = vmatpush.bf16.msra.mxu0 %v628
    %705 = vmatpush.bf16.msra.mxu0 %v627
    %706 = vmatpush.bf16.msra.mxu0 %v626
    %707 = vmatpush.bf16.msra.mxu0 %v625
    %708 = vmatpush.bf16.msra.mxu0 %v624
    %709 = vmatpush.bf16.msra.mxu0 %v623
    %710 = vmatmul.bf16.gmra.mxu0 %v402
    %v711 = vpop.f32.mrf.mxu0
    %v712 = vadd.f32 %v699, %v711
    %v713 = vpop.f32.mrf.mxu0
    %714 = vdwg.mxu0
    %v715 = vmax.f32 %v712, 0.0
    %v716 = vpack.c.bf16 %v715, %v715
    %v717 = vld [vmem:[#allocation11] sm:$0xf]
    %v718 = vld [vmem:[#allocation11 + $0x4] sm:$0xf]
    %v719 = vld [vmem:[#allocation11 + $0x8] sm:$0xf]
    %v720 = vld [vmem:[#allocation11 + $0xc] sm:$0xf]
    %v721 = vld [vmem:[#allocation11 + $0x10] sm:$0xf]
    %v722 = vld [vmem:[#allocation11 + $0x14] sm:$0xf]
    %v723 = vld [vmem:[#allocation11 + $0x18] sm:$0xf]
    %v724 = vld [vmem:[#allocation11 + $0x1c] sm:$0xf]
    %v725 = vld [vmem:[#allocation11 + $0x20] sm:$0xf]
    %v726 = vld [vmem:[#allocation11 + $0x24] sm:$0xf]
    %v727 = vld [vmem:[#allocation11 + $0x28] sm:$0xf]
    %v728 = vld [vmem:[#allocation11 + $0x2c] sm:$0xf]
    %v729 = vld [vmem:[#allocation11 + $0x30] sm:$0xf]
    %v730 = vld [vmem:[#allocation11 + $0x34] sm:$0xf]
    %v731 = vld [vmem:[#allocation11 + $0x38] sm:$0xf]
    %v732 = vld [vmem:[#allocation11 + $0x3c] sm:$0xf]
    %v733 = vld [vmem:[%s7] sm:$0x1]
    %v735 = vperm.slane %v733, 0
    %v753 = vunpack.c.l.b16 %v717
    %v754 = vunpack.c.l.b16 %v718
    %v755 = vunpack.c.l.b16 %v719
    %v756 = vunpack.c.l.b16 %v720
    %v757 = vunpack.c.l.b16 %v721
    %v758 = vunpack.c.l.b16 %v722
    %v759 = vunpack.c.l.b16 %v723
    %v760 = vunpack.c.l.b16 %v724
    %v761 = vunpack.c.l.b16 %v725
    %v762 = vunpack.c.l.b16 %v726
    %v763 = vunpack.c.l.b16 %v727
    %v764 = vunpack.c.l.b16 %v728
    %v765 = vunpack.c.l.b16 %v729
    %v766 = vunpack.c.l.b16 %v730
    %v767 = vunpack.c.l.b16 %v731
    %v768 = vunpack.c.l.b16 %v732
    %v769 = vpack.c.b16 %v754, %v753
    %v770 = vpack.c.b16 %v756, %v755
    %v771 = vpack.c.b16 %v758, %v757
    %v772 = vpack.c.b16 %v760, %v759
    %v773 = vpack.c.b16 %v762, %v761
    %v774 = vpack.c.b16 %v764, %v763
    %v775 = vpack.c.b16 %v766, %v765
    %v776 = vpack.c.b16 %v768, %v767
    %785 = vmatpush.bf16.msra.mxu0 %v776
    %786 = vmatpush.bf16.msra.mxu0 %v775
    %787 = vmatpush.bf16.msra.mxu0 %v774
    %788 = vmatpush.bf16.msra.mxu0 %v773
    %789 = vmatpush.bf16.msra.mxu0 %v772
    %790 = vmatpush.bf16.msra.mxu0 %v771
    %791 = vmatpush.bf16.msra.mxu0 %v770
    %792 = vmatpush.bf16.msra.mxu0 %v769
    %793 = vmatmul.bf16.gmra.mxu0 %v716
    %v794 = vpop.f32.mrf.mxu0
    %v795 = vadd.f32 %v735, %v794
    %v796 = vpop.f32.mrf.mxu0
    %797 = vdwg.mxu0
    %798 = vst [vmem:[#allocation13] sm:$0x3] %v795
    // Predicated region
    $region58: #{tpu_custom_call.1} parent=1 // pred_check
      _
    $region59: #{tpu_custom_call.1} parent=1 // pred_check_branch
      %800 = sbr.rel (0) target = $region61
    $region60: #{tpu_custom_call.1} parent=1 // pred_region
      %802 = vsyncadd [#allocation4], 0
      %s804 = sshll.u32 [#allocation13], 4
      %s805 = int_to_ptr.vmem [resolvable:$true] %s804
      %s806 = sshll.u32 %s8, 4
      %s807 = int_to_ptr.hbm [resolvable:$true] %s806
      %809 = dma.vmem_to_hbm [thread:$0]  %s805, 32, %s807, [#allocation4]
    $region61: #{tpu_custom_call.1} parent=1 // pred_fallthru
      _
    // Predicated region
    $region62: #{tpu_custom_call.1} parent=1 // pred_check
      _
    $region63: #{tpu_custom_call.1} parent=1 // pred_check_branch
      %811 = sbr.rel (0) target = $region65
    $region64: #{tpu_custom_call.1} parent=1 // pred_region
      %813 = dma.done [#allocation4], 32
    $region65: #{tpu_custom_call.1} parent=1 // pred_fallthru
      _
    %814 = vsyncpa [#allocation3], 1
    %815 = vsyncpa [#allocation6], 1
    %816 = vsyncpa [#allocation9], 1
    %817 = vsyncpa [#allocation12], 1
    %818 = vsyncpa [#allocation4], 1

</llo_original>
